<compile_context>
chip_gen: v7x
topology: tpu7x:2x2x1
jax: 0.10.0
libtpu: 0.0.40
codegen_flags: <defaults>
</compile_context>

<pallas_src>
import functools

import jax
import jax.numpy as jnp
from jax.experimental import pallas as pl
from jax.experimental.pallas import tpu as pltpu

_LANE = 128      # vreg lane width  -> feature dims padded to multiples of this
_SUBLANE = 8     # vreg sublanes    -> batch tile kept a multiple of this

# Below this total (padded) parameter footprint, default double-buffering of
# the constant weight blocks is harmless; above it, single-buffer them so the
# whole MLP stays VMEM-resident (matters most against v7x's 64 MiB VMEM).
_SINGLE_BUFFER_PARAM_BYTES = 1 << 20


def _round_up(x, m):
    return (x + m - 1) // m * m


def _cdiv(a, b):
    return (a + b - 1) // b


def _pad_to(a, shape):
    pads = [(0, s - d) for d, s in zip(a.shape, shape)]
    if all(p == (0, 0) for p in pads):
        return a
    return jnp.pad(a, pads)


def init_mlp_params(key, layer_sizes):
    """Deterministic init mimicking nn.Linear's uniform(-1/sqrt(in), 1/sqrt(in)).

    Weights are stored already transposed to (din, dout) for the kernel."""
    params = []
    for i in range(len(layer_sizes) - 1):
        din, dout = int(layer_sizes[i]), int(layer_sizes[i + 1])
        key, kw, kb = jax.random.split(key, 3)
        bound = 1.0 / (din ** 0.5)
        w = jax.random.uniform(kw, (din, dout), jnp.float32, -bound, bound)
        b = jax.random.uniform(kb, (1, dout), jnp.float32, -bound, bound)
        params.append((w, b))
    return params


def prepare_mlp_params(params, param_dtype=jnp.float32):
    """Pad every weight/bias to lane-dense (128-multiple) shapes ONCE.

    Done at init time so forward calls never re-pad.  Weights may be stored in
    bfloat16 (half the DMA bytes, native bf16 MXU rate); biases stay f32 since
    the bias-add runs in f32 on the VPU.  Zero padding is exact through dot,
    ReLU and bias-add.
    """
    padded = []
    for w, b in params:
        d_in, d_out = w.shape
        d_in_p, d_out_p = _round_up(d_in, _LANE), _round_up(d_out, _LANE)
        w_p = _pad_to(w, (d_in_p, d_out_p)).astype(param_dtype)
        b_p = _pad_to(b, (1, d_out_p)).astype(jnp.float32)
        padded.append((w_p, b_p))
    return padded


def _mlp_fused_kernel(*refs, num_layers, final_relu_layer):
    """One batch tile through the whole MLP; activations never leave VMEM/vregs.

    refs = (x_ref, w0_ref, b0_ref, ..., w_{L-1}_ref, b_{L-1}_ref, o_ref).
    """
    x_ref = refs[0]
    o_ref = refs[-1]
    wb = refs[1:-1]

    h = x_ref[...].astype(jnp.float32)
    for i in range(num_layers):
        if i < final_relu_layer:
            h = jnp.maximum(h, 0.0)              # ReLU precedes Linear i (f32 VPU)
        w = wb[2 * i][...]
        b = wb[2 * i + 1][...]
        # Cast only the dot operand to the stored weight dtype (f32 or bf16);
        # accumulate in f32 on the MXU; bias-add once, in f32.
        h = jnp.dot(h.astype(w.dtype), w, preferred_element_type=jnp.float32)
        h = h + b.astype(jnp.float32)
    o_ref[...] = h.astype(o_ref.dtype)


def mlp_forward(x, padded_params, *, out_dim, final_relu=False, batch_tile=512):
    """x: (B, Din).  padded_params: output of prepare_mlp_params (padded once)."""
    num_layers = len(padded_params)
    final_relu_layer = num_layers if final_relu else num_layers - 1

    B, din0 = x.shape
    din0_p = padded_params[0][0].shape[0]
    assert din0 <= din0_p, "input width exceeds prepared params"
    d_out_last_p = padded_params[-1][0].shape[1]

    # ---- balanced batch tiling (the only grid axis) ----
    B_p = _round_up(B, _SUBLANE)
    max_tile = max(_SUBLANE, min(batch_tile, B_p))
    num_tiles = _cdiv(B_p, max_tile)
    # v7x megacore: once there is enough work, give the "parallel" axis >= 2
    # steps so both TensorCores get a share (harmless on single-TC v5e/v6e).
    if B_p >= 2 * _SUBLANE:
        num_tiles = max(num_tiles, 2)
    # Balanced tiles: divide B as evenly as possible instead of rounding B up
    # to a multiple of batch_tile (avoids a mostly-zero last tile).
    # (On v5e with bf16 weights and very large batches a 128-multiple tile_b
    #  maps best onto the 4x128x128 MXU; kept 8-aligned here to minimize pad.)
    tile_b = _round_up(_cdiv(B_p, num_tiles), _SUBLANE)
    num_tiles = _cdiv(B_p, tile_b)
    B_pad = tile_b * num_tiles

    # ---- input padding (input changes per call; weights were padded once) ----
    x_p = _pad_to(x, (B_pad, din0_p))

    # ---- specs: weights/biases VMEM-resident via constant index_maps ----
    param_bytes = sum(
        w.size * w.dtype.itemsize + b.size * b.dtype.itemsize
        for w, b in padded_params
    )
    single_buffer = param_bytes > _SINGLE_BUFFER_PARAM_BYTES
    wb_mode = {"pipeline_mode": pl.Buffered(1)} if single_buffer else {}

    flat = [x_p]
    in_specs = [pl.BlockSpec((tile_b, din0_p), lambda i: (i, 0))]
    for w_p, b_p in padded_params:
        d_in_p, d_out_p = w_p.shape
        flat += [w_p, b_p]
        in_specs += [
            pl.BlockSpec((d_in_p, d_out_p), lambda i: (0, 0), **wb_mode),
            pl.BlockSpec((1, d_out_p), lambda i: (0, 0), **wb_mode),
        ]

    # ---- VMEM budget / scheduler hints ----
    widths = [din0_p] + [w.shape[1] for w, _ in padded_params]
    act_bytes = 4 * tile_b * max(widths) * 4                 # f32 intermediates
    io_bytes = 2 * tile_b * (din0_p + d_out_last_p) * x.dtype.itemsize
    vmem_need = (1 if single_buffer else 2) * param_bytes + act_bytes + io_bytes
    vmem_limit = None
    if vmem_need > (12 << 20):                               # beyond scoped defaults
        vmem_limit = min(int(vmem_need * 1.5) + (4 << 20), 112 << 20)

    flops = 2 * B_pad * sum(w.shape[0] * w.shape[1] for w, _ in padded_params)
    bytes_accessed = (
        x_p.size * x_p.dtype.itemsize
        + B_pad * d_out_last_p * x.dtype.itemsize
        + param_bytes
    )

    kernel = functools.partial(
        _mlp_fused_kernel,
        num_layers=num_layers,
        final_relu_layer=final_relu_layer,
    )

    out_p = pl.pallas_call(
        kernel,
        out_shape=jax.ShapeDtypeStruct((B_pad, d_out_last_p), x.dtype),
        grid=(num_tiles,),
        in_specs=in_specs,
        out_specs=pl.BlockSpec((tile_b, d_out_last_p), lambda i: (i, 0)),
        compiler_params=pltpu.CompilerParams(
            dimension_semantics=("parallel",),               # batch tiles independent
            vmem_limit_bytes=vmem_limit,
        ),
        cost_estimate=pl.CostEstimate(
            flops=flops, transcendentals=0, bytes_accessed=bytes_accessed),
    )(*flat)

    return out_p[:B, :out_dim]

# TODO(synk): if padded layer widths ever outgrow VMEM residency (notably on
# v7x's 64 MiB), add a trailing "arbitrary" K grid axis with a pl.when-zeroed
# f32 accumulator instead of keeping every weight resident.


def mlp_reference(x, params, *, final_relu=False):
    """Pure-JAX reference matching MLP.forward."""
    num_layers = len(params)
    final_relu_layer = num_layers if final_relu else num_layers - 1
    for i, (w, b) in enumerate(params):
        if i < final_relu_layer:
            x = jnp.maximum(x, 0.0)
        x = x @ w + b
    return x


if __name__ == "__main__":
    layer_sizes = [32, 64, 48, 16]
    batch = 8

    key = jax.random.PRNGKey(0)
    key, kx = jax.random.split(key)
    x = jax.random.normal(kx, (batch, layer_sizes[0]), jnp.float32)
    params = init_mlp_params(key, layer_sizes)
    ref = mlp_reference(x, params, final_relu=False)

    fwd = jax.jit(functools.partial(
        mlp_forward, out_dim=layer_sizes[-1], final_relu=False))

    # Exact-parity path: f32 weights (padded once, outside the jitted forward).
    params_f32 = prepare_mlp_params(params, param_dtype=jnp.float32)
    out = jax.block_until_ready(fwd(x, params_f32))
    assert out.shape == (batch, layer_sizes[-1])
    assert jnp.allclose(out, ref, atol=1e-5, rtol=1e-5), "f32 mismatch vs reference"

    # Perf path: bf16 weights on the MXU, f32 accumulation / bias-add / ReLU.
    params_bf16 = prepare_mlp_params(params, param_dtype=jnp.bfloat16)
    out_bf16 = jax.block_until_ready(fwd(x, params_bf16))
    assert out_bf16.shape == (batch, layer_sizes[-1])
    assert jnp.allclose(out_bf16, ref, atol=5e-2, rtol=5e-2), "bf16 mismatch vs reference"

    # Multi-tile / megacore path: batch big enough to force >= 2 grid steps.
    batch2 = 48
    key, kx2 = jax.random.split(key)
    x2 = jax.random.normal(kx2, (batch2, layer_sizes[0]), jnp.float32)
    out2 = jax.block_until_ready(fwd(x2, params_f32))
    ref2 = mlp_reference(x2, params, final_relu=False)
    assert out2.shape == (batch2, layer_sizes[-1])
    assert jnp.allclose(out2, ref2, atol=1e-5, rtol=1e-5), "multi-tile mismatch"

    print("KERNEL_OK")
</pallas_src>

<mosaic_0001>
module attributes {stable_mosaic.version = 11 : i64} {
  func.func @_mlp_fused_kernel(%arg0: i32, %arg1: memref<8x128xf32, #tpu.memory_space<vmem>>, %arg2: memref<128x128xf32, #tpu.memory_space<vmem>>, %arg3: memref<1x128xf32, #tpu.memory_space<vmem>>, %arg4: memref<128x128xf32, #tpu.memory_space<vmem>>, %arg5: memref<1x128xf32, #tpu.memory_space<vmem>>, %arg6: memref<128x128xf32, #tpu.memory_space<vmem>>, %arg7: memref<1x128xf32, #tpu.memory_space<vmem>>, %arg8: memref<8x128xf32, #tpu.memory_space<vmem>>) attributes {dimension_semantics = [#tpu.dimension_semantics<parallel>], iteration_bounds = array<i64: 1>, scalar_prefetch = 0 : i64, scratch_operands = 0 : i64, tpu.core_type = #tpu.core_type<tc>, window_params = [{transform_indices = @transform_0, window_bounds = array<i64: 8, 128>}, {pipeline_mode = #tpu.pipeline_mode<synchronous>, transform_indices = @transform_1, window_bounds = array<i64: 128, 128>}, {pipeline_mode = #tpu.pipeline_mode<synchronous>, transform_indices = @transform_2, window_bounds = array<i64: 1, 128>}, {pipeline_mode = #tpu.pipeline_mode<synchronous>, transform_indices = @transform_3, window_bounds = array<i64: 128, 128>}, {pipeline_mode = #tpu.pipeline_mode<synchronous>, transform_indices = @transform_4, window_bounds = array<i64: 1, 128>}, {pipeline_mode = #tpu.pipeline_mode<synchronous>, transform_indices = @transform_5, window_bounds = array<i64: 128, 128>}, {pipeline_mode = #tpu.pipeline_mode<synchronous>, transform_indices = @transform_6, window_bounds = array<i64: 1, 128>}, {transform_indices = @transform_7, window_bounds = array<i64: 8, 128>}]} {
    %c0 = arith.constant 0 : index
    %c0_0 = arith.constant 0 : index
    %0 = vector.load %arg1[%c0, %c0_0] : memref<8x128xf32, #tpu.memory_space<vmem>>, vector<8x128xf32>
    %cst = arith.constant 0.000000e+00 : f32
    %1 = vector.broadcast %cst : f32 to vector<8x128xf32>
    %2 = arith.maximumf %0, %1 : vector<8x128xf32>
    %c0_1 = arith.constant 0 : index
    %c0_2 = arith.constant 0 : index
    %3 = vector.load %arg2[%c0_1, %c0_2] : memref<128x128xf32, #tpu.memory_space<vmem>>, vector<128x128xf32>
    %c0_3 = arith.constant 0 : index
    %c0_4 = arith.constant 0 : index
    %4 = vector.load %arg3[%c0_3, %c0_4] : memref<1x128xf32, #tpu.memory_space<vmem>>, vector<1x128xf32>
    %cst_5 = arith.constant dense<0.000000e+00> : vector<8x128xf32>
    %5 = tpu.matmul %2, %3, %cst_5 {dimension_numbers = #tpu.dot_dimension_numbers<[1], [0], [0], [1], [0, 0, 1, 1], [], []>} : vector<8x128xf32>, vector<128x128xf32>, vector<8x128xf32> -> vector<8x128xf32>
    %6 = vector.broadcast %4 : vector<1x128xf32> to vector<8x128xf32>
    %7 = arith.addf %5, %6 : vector<8x128xf32>
    %cst_6 = arith.constant 0.000000e+00 : f32
    %8 = vector.broadcast %cst_6 : f32 to vector<8x128xf32>
    %9 = arith.maximumf %7, %8 : vector<8x128xf32>
    %c0_7 = arith.constant 0 : index
    %c0_8 = arith.constant 0 : index
    %10 = vector.load %arg4[%c0_7, %c0_8] : memref<128x128xf32, #tpu.memory_space<vmem>>, vector<128x128xf32>
    %c0_9 = arith.constant 0 : index
    %c0_10 = arith.constant 0 : index
    %11 = vector.load %arg5[%c0_9, %c0_10] : memref<1x128xf32, #tpu.memory_space<vmem>>, vector<1x128xf32>
    %cst_11 = arith.constant dense<0.000000e+00> : vector<8x128xf32>
    %12 = tpu.matmul %9, %10, %cst_11 {dimension_numbers = #tpu.dot_dimension_numbers<[1], [0], [0], [1], [0, 0, 1, 1], [], []>} : vector<8x128xf32>, vector<128x128xf32>, vector<8x128xf32> -> vector<8x128xf32>
    %13 = vector.broadcast %11 : vector<1x128xf32> to vector<8x128xf32>
    %14 = arith.addf %12, %13 : vector<8x128xf32>
    %c0_12 = arith.constant 0 : index
    %c0_13 = arith.constant 0 : index
    %15 = vector.load %arg6[%c0_12, %c0_13] : memref<128x128xf32, #tpu.memory_space<vmem>>, vector<128x128xf32>
    %c0_14 = arith.constant 0 : index
    %c0_15 = arith.constant 0 : index
    %16 = vector.load %arg7[%c0_14, %c0_15] : memref<1x128xf32, #tpu.memory_space<vmem>>, vector<1x128xf32>
    %cst_16 = arith.constant dense<0.000000e+00> : vector<8x128xf32>
    %17 = tpu.matmul %14, %15, %cst_16 {dimension_numbers = #tpu.dot_dimension_numbers<[1], [0], [0], [1], [0, 0, 1, 1], [], []>} : vector<8x128xf32>, vector<128x128xf32>, vector<8x128xf32> -> vector<8x128xf32>
    %18 = vector.broadcast %16 : vector<1x128xf32> to vector<8x128xf32>
    %19 = arith.addf %17, %18 : vector<8x128xf32>
    %c0_17 = arith.constant 0 : index
    %c0_18 = arith.constant 0 : index
    %20 = vector.load %arg8[%c0_17, %c0_18] : memref<8x128xf32, #tpu.memory_space<vmem>>, vector<8x128xf32>
    tpu.vector_store %arg8[%c0_17, %c0_18], %19 {strides = array<i32>} : memref<8x128xf32, #tpu.memory_space<vmem>>, vector<8x128xf32>,
    return
  }
  func.func @transform_0(%arg0: i32) -> (i32, i32) {
    %c0_i32 = arith.constant 0 : i32
    %c0_i32_0 = arith.constant 0 : i32
    return %arg0, %c0_i32 : i32, i32
  }
  func.func @transform_1(%arg0: i32) -> (i32, i32) {
    %c0_i32 = arith.constant 0 : i32
    %c0_i32_0 = arith.constant 0 : i32
    %c0_i32_1 = arith.constant 0 : i32
    return %c0_i32, %c0_i32_0 : i32, i32
  }
  func.func @transform_2(%arg0: i32) -> (i32, i32) {
    %c0_i32 = arith.constant 0 : i32
    %c0_i32_0 = arith.constant 0 : i32
    %c0_i32_1 = arith.constant 0 : i32
    return %c0_i32, %c0_i32_0 : i32, i32
  }
  func.func @transform_3(%arg0: i32) -> (i32, i32) {
    %c0_i32 = arith.constant 0 : i32
    %c0_i32_0 = arith.constant 0 : i32
    %c0_i32_1 = arith.constant 0 : i32
    return %c0_i32, %c0_i32_0 : i32, i32
  }
  func.func @transform_4(%arg0: i32) -> (i32, i32) {
    %c0_i32 = arith.constant 0 : i32
    %c0_i32_0 = arith.constant 0 : i32
    %c0_i32_1 = arith.constant 0 : i32
    return %c0_i32, %c0_i32_0 : i32, i32
  }
  func.func @transform_5(%arg0: i32) -> (i32, i32) {
    %c0_i32 = arith.constant 0 : i32
    %c0_i32_0 = arith.constant 0 : i32
    %c0_i32_1 = arith.constant 0 : i32
    return %c0_i32, %c0_i32_0 : i32, i32
  }
  func.func @transform_6(%arg0: i32) -> (i32, i32) {
    %c0_i32 = arith.constant 0 : i32
    %c0_i32_0 = arith.constant 0 : i32
    %c0_i32_1 = arith.constant 0 : i32
    return %c0_i32, %c0_i32_0 : i32, i32
  }
  func.func @transform_7(%arg0: i32) -> (i32, i32) {
    %c0_i32 = arith.constant 0 : i32
    %c0_i32_0 = arith.constant 0 : i32
    return %arg0, %c0_i32 : i32, i32
  }
}

</mosaic_0001>

<llo_original>
// kernel: mlp_forward.1
$region0: #{mlp_forward.1}
  #allocation0 [shape = 'u32[]', space=smem, size = 0x4, offset = 0x4, fixed_abs, tag = 'smem constant byte address 0x4 - core index']
  #allocation1 [shape = 'u32[144,128]{1,0:T(1,128)}', space=vmem, size = 0x12000, scoped, tag = 'internal scratch']
  %s0 = inlined_call_operand.vmem [shape: f32[8,128], index: 0, kind: input, shape index: {}]
  %s1 = inlined_call_operand.hbm [shape: f32[128,128], index: 1, kind: input, shape index: {}]
  %s2 = inlined_call_operand.vmem [shape: f32[1,128], index: 2, kind: input, shape index: {}]
  %s3 = inlined_call_operand.hbm [shape: f32[128,128], index: 3, kind: input, shape index: {}]
  %s4 = inlined_call_operand.vmem [shape: f32[1,128], index: 4, kind: input, shape index: {}]
  %s5 = inlined_call_operand.hbm [shape: f32[128,128], index: 5, kind: input, shape index: {}]
  %s6 = inlined_call_operand.vmem [shape: f32[1,128], index: 6, kind: input, shape index: {}]
  %s7 = inlined_call_operand.hbm [shape: f32[8,128], index: 7, kind: output, shape index: {}]
  %s8 = sld [smem:[#allocation0]]
  $region50: #{mlp_forward.1} parent=0
    _
  %s10 = ssub.s32 1, %s8
  %s11 = scalar_select 0, %s10, %s8
  $region1: #{mlp_forward.1} parent=0
    #allocation2 [shape = 'u8[65536]{0}', space=vmem, size = 0x10000, scoped, tag = 'input window, operand 1, single buffered']
    #allocation3 [shape = 's32[1]{0}', space=sflag, size = 0x4, scoped, tag = 'scoped memory for mlp_forward.1']
    #allocation4 [shape = 's32[1]{0}', space=sflag, size = 0x4, scoped, tag = 'scoped memory for mlp_forward.1']
    #allocation5 [shape = 'u8[65536]{0}', space=vmem, size = 0x10000, scoped, tag = 'input window, operand 3, single buffered']
    #allocation6 [shape = 's32[1]{0}', space=sflag, size = 0x4, scoped, tag = 'scoped memory for mlp_forward.1']
    #allocation7 [shape = 'u8[65536]{0}', space=vmem, size = 0x10000, scoped, tag = 'input window, operand 5, single buffered']
    #allocation8 [shape = 'u8[4096]{0}', space=vmem, size = 0x1000, scoped, tag = 'output window, operand 0, single buffered']
    %12 = vsyncpa [#allocation3], 0
    %13 = vsyncpa [#allocation6], 0
    %14 = vsyncpa [#allocation4], 0
    // Predicated region
    $region2: #{mlp_forward.1} parent=1 // pred_check
      _
    $region3: #{mlp_forward.1} parent=1 // pred_check_branch
      %16 = sbr.rel (0) target = $region5
    $region4: #{mlp_forward.1} parent=1 // pred_region
      _
    $region5: #{mlp_forward.1} parent=1 // pred_fallthru
      _
    // Predicated region
    $region6: #{mlp_forward.1} parent=1 // pred_check
      _
    $region7: #{mlp_forward.1} parent=1 // pred_check_branch
      %18 = sbr.rel (0) target = $region9
    $region8: #{mlp_forward.1} parent=1 // pred_region
      %s20 = ssub.s32 2048, 2048
      %21 = vsyncadd [#allocation3], %s20
      %s22 = sshll.u32 [#allocation2], 4
      %s23 = int_to_ptr.vmem [resolvable:$true] %s22
      %28 = dma.hbm_to_vmem [thread:$0]  %s1, 2048, %s23, [#allocation3], 128, 128, 8
    $region9: #{mlp_forward.1} parent=1 // pred_fallthru
      _
    // Predicated region
    $region10: #{mlp_forward.1} parent=1 // pred_check
      _
    $region11: #{mlp_forward.1} parent=1 // pred_check_branch
      %30 = sbr.rel (0) target = $region13
    $region12: #{mlp_forward.1} parent=1 // pred_region
      _
    $region13: #{mlp_forward.1} parent=1 // pred_fallthru
      _
    // Predicated region
    $region14: #{mlp_forward.1} parent=1 // pred_check
      _
    $region15: #{mlp_forward.1} parent=1 // pred_check_branch
      %32 = sbr.rel (0) target = $region17
    $region16: #{mlp_forward.1} parent=1 // pred_region
      %s34 = ssub.s32 2048, 2048
      %35 = vsyncadd [#allocation6], %s34
      %s36 = sshll.u32 [#allocation5], 4
      %s37 = int_to_ptr.vmem [resolvable:$true] %s36
      %42 = dma.hbm_to_vmem [thread:$0]  %s3, 2048, %s37, [#allocation6], 128, 128, 8
    $region17: #{mlp_forward.1} parent=1 // pred_fallthru
      _
    // Predicated region
    $region18: #{mlp_forward.1} parent=1 // pred_check
      _
    $region19: #{mlp_forward.1} parent=1 // pred_check_branch
      %44 = sbr.rel (0) target = $region21
    $region20: #{mlp_forward.1} parent=1 // pred_region
      _
    $region21: #{mlp_forward.1} parent=1 // pred_fallthru
      _
    // Predicated region
    $region22: #{mlp_forward.1} parent=1 // pred_check
      _
    $region23: #{mlp_forward.1} parent=1 // pred_check_branch
      %46 = sbr.rel (0) target = $region25
    $region24: #{mlp_forward.1} parent=1 // pred_region
      %s48 = ssub.s32 2048, 2048
      %49 = vsyncadd [#allocation6], %s48
      %s50 = sshll.u32 [#allocation7], 4
      %s51 = int_to_ptr.vmem [resolvable:$true] %s50
      %56 = dma.hbm_to_vmem [thread:$0]  %s5, 2048, %s51, [#allocation6], 128, 128, 8
    $region25: #{mlp_forward.1} parent=1 // pred_fallthru
      _
    // Predicated region
    $region26: #{mlp_forward.1} parent=1 // pred_check
      _
    $region27: #{mlp_forward.1} parent=1 // pred_check_branch
      %58 = sbr.rel (0) target = $region29
    $region28: #{mlp_forward.1} parent=1 // pred_region
      _
    $region29: #{mlp_forward.1} parent=1 // pred_fallthru
      _
    // Predicated region
    $region30: #{mlp_forward.1} parent=1 // pred_check
      _
    $region31: #{mlp_forward.1} parent=1 // pred_check_branch
      %60 = sbr.rel (0) target = $region33
    $region32: #{mlp_forward.1} parent=1 // pred_region
      %61 = dma.done [#allocation3], 2048
    $region33: #{mlp_forward.1} parent=1 // pred_fallthru
      _
    // Predicated region
    $region34: #{mlp_forward.1} parent=1 // pred_check
      _
    $region35: #{mlp_forward.1} parent=1 // pred_check_branch
      %63 = sbr.rel (0) target = $region37
    $region36: #{mlp_forward.1} parent=1 // pred_region
      %64 = dma.done [#allocation6], 2048
    $region37: #{mlp_forward.1} parent=1 // pred_fallthru
      _
    // Predicated region
    $region38: #{mlp_forward.1} parent=1 // pred_check
      _
    $region39: #{mlp_forward.1} parent=1 // pred_check_branch
      %66 = sbr.rel (0) target = $region41
    $region40: #{mlp_forward.1} parent=1 // pred_region
      %67 = dma.done [#allocation6], 2048
    $region41: #{mlp_forward.1} parent=1 // pred_fallthru
      _
    %v68 = vld [vmem:[%s0] sm:$0xff]
    %v69 = vmax.f32 %v68, 0.0
    %v70 = vld [vmem:[#allocation2] sm:$0xff]
    %v71 = vld [vmem:[#allocation2 + $0x8] sm:$0xff]
    %v72 = vld [vmem:[#allocation2 + $0x10] sm:$0xff]
    %v73 = vld [vmem:[#allocation2 + $0x18] sm:$0xff]
    %v74 = vld [vmem:[#allocation2 + $0x20] sm:$0xff]
    %v75 = vld [vmem:[#allocation2 + $0x28] sm:$0xff]
    %v76 = vld [vmem:[#allocation2 + $0x30] sm:$0xff]
    %v77 = vld [vmem:[#allocation2 + $0x38] sm:$0xff]
    %v78 = vld [vmem:[#allocation2 + $0x40] sm:$0xff]
    %v79 = vld [vmem:[#allocation2 + $0x48] sm:$0xff]
    %v80 = vld [vmem:[#allocation2 + $0x50] sm:$0xff]
    %v81 = vld [vmem:[#allocation2 + $0x58] sm:$0xff]
    %v82 = vld [vmem:[#allocation2 + $0x60] sm:$0xff]
    %v83 = vld [vmem:[#allocation2 + $0x68] sm:$0xff]
    %v84 = vld [vmem:[#allocation2 + $0x70] sm:$0xff]
    %v85 = vld [vmem:[#allocation2 + $0x78] sm:$0xff]
    %v86 = vld [vmem:[%s2] sm:$0x1]
    %v88 = vlaneseq
    %v89 = vshrl.u32 %v88, 7
    %v90 = vsub.s32 0, %v89
    %v91 = vrot.slane %v86, %v90
    %93 = vmatprep.subr.mxu0 0.0
    %94 = vmatpush1.msra.mxu0 %v70
    %95 = vmatprep.subr.mxu0 0.0
    %96 = vmatpush1.msra.mxu0 %v71
    %97 = vmatprep.subr.mxu0 0.0
    %98 = vmatpush1.msra.mxu0 %v72
    %99 = vmatprep.subr.mxu0 0.0
    %100 = vmatpush1.msra.mxu0 %v73
    %101 = vmatprep.subr.mxu0 0.0
    %102 = vmatpush1.msra.mxu0 %v74
    %103 = vmatprep.subr.mxu0 0.0
    %104 = vmatpush1.msra.mxu0 %v75
    %105 = vmatprep.subr.mxu0 0.0
    %106 = vmatpush1.msra.mxu0 %v76
    %107 = vmatprep.subr.mxu0 0.0
    %108 = vmatpush1.msra.mxu0 %v77
    %109 = vmatprep.subr.mxu0 0.0
    %110 = vmatpush1.msra.mxu0 %v78
    %111 = vmatprep.subr.mxu0 0.0
    %112 = vmatpush1.msra.mxu0 %v79
    %113 = vmatprep.subr.mxu0 0.0
    %114 = vmatpush1.msra.mxu0 %v80
    %115 = vmatprep.subr.mxu0 0.0
    %116 = vmatpush1.msra.mxu0 %v81
    %117 = vmatprep.subr.mxu0 0.0
    %118 = vmatpush1.msra.mxu0 %v82
    %119 = vmatprep.subr.mxu0 0.0
    %120 = vmatpush1.msra.mxu0 %v83
    %121 = vmatprep.subr.mxu0 0.0
    %122 = vmatpush1.msra.mxu0 %v84
    %123 = vmatprep.subr.mxu0 0.0
    %124 = vmatpush1.msra.mxu0 %v85
    %125 = vmatprep.subr.mxu0 0.0
    %126 = vmatpush1.msra.mxu0 0.0
    %127 = vmatprep.subr.mxu0 0.0
    %128 = vmatpush1.msra.mxu0 0.0
    %129 = vmatprep.subr.mxu0 0.0
    %130 = vmatpush1.msra.mxu0 0.0
    %131 = vmatprep.subr.mxu0 0.0
    %132 = vmatpush1.msra.mxu0 0.0
    %133 = vmatprep.subr.mxu0 0.0
    %134 = vmatpush1.msra.mxu0 0.0
    %135 = vmatprep.subr.mxu0 0.0
    %136 = vmatpush1.msra.mxu0 0.0
    %137 = vmatprep.subr.mxu0 0.0
    %138 = vmatpush1.msra.mxu0 0.0
    %139 = vmatprep.subr.mxu0 0.0
    %140 = vmatpush1.msra.mxu0 0.0
    %141 = vmatprep.subr.mxu0 0.0
    %142 = vmatpush1.msra.mxu0 0.0
    %143 = vmatprep.subr.mxu0 0.0
    %144 = vmatpush1.msra.mxu0 0.0
    %145 = vmatprep.subr.mxu0 0.0
    %146 = vmatpush1.msra.mxu0 0.0
    %147 = vmatprep.subr.mxu0 0.0
    %148 = vmatpush1.msra.mxu0 0.0
    %149 = vmatprep.subr.mxu0 0.0
    %150 = vmatpush1.msra.mxu0 0.0
    %151 = vmatprep.subr.mxu0 0.0
    %152 = vmatpush1.msra.mxu0 0.0
    %153 = vmatprep.subr.mxu0 0.0
    %154 = vmatpush1.msra.mxu0 0.0
    %155 = vmatprep.subr.mxu0 0.0
    %156 = vmatpush1.msra.mxu0 0.0
    %157 = vmatprep.mubr.f32.mxu0 0.0
    %158 = vmatmul.mubr.f32.gmra.mrb[0].mxu0 %v69
    %v159 = vpop.f32.mrb[0].mxu0
    %v160 = vadd.f32 %v91, %v159
    %v161 = vpop.f32.mrb[0].mxu0
    %162 = vdwg.mxu0
    %v163 = vmax.f32 %v160, 0.0
    %v164 = vld [vmem:[#allocation5] sm:$0xff]
    %v165 = vld [vmem:[#allocation5 + $0x8] sm:$0xff]
    %v166 = vld [vmem:[#allocation5 + $0x10] sm:$0xff]
    %v167 = vld [vmem:[#allocation5 + $0x18] sm:$0xff]
    %v168 = vld [vmem:[#allocation5 + $0x20] sm:$0xff]
    %v169 = vld [vmem:[#allocation5 + $0x28] sm:$0xff]
    %v170 = vld [vmem:[#allocation5 + $0x30] sm:$0xff]
    %v171 = vld [vmem:[#allocation5 + $0x38] sm:$0xff]
    %v172 = vld [vmem:[#allocation5 + $0x40] sm:$0xff]
    %v173 = vld [vmem:[#allocation5 + $0x48] sm:$0xff]
    %v174 = vld [vmem:[#allocation5 + $0x50] sm:$0xff]
    %v175 = vld [vmem:[#allocation5 + $0x58] sm:$0xff]
    %v176 = vld [vmem:[#allocation5 + $0x60] sm:$0xff]
    %v177 = vld [vmem:[#allocation5 + $0x68] sm:$0xff]
    %v178 = vld [vmem:[#allocation5 + $0x70] sm:$0xff]
    %v179 = vld [vmem:[#allocation5 + $0x78] sm:$0xff]
    %v180 = vld [vmem:[%s4] sm:$0x1]
    %v182 = vlaneseq
    %v183 = vshrl.u32 %v182, 7
    %v184 = vsub.s32 0, %v183
    %v185 = vrot.slane %v180, %v184
    %187 = vmatprep.subr.mxu0 0.0
    %188 = vmatpush1.msra.mxu0 %v164
    %189 = vmatprep.subr.mxu0 0.0
    %190 = vmatpush1.msra.mxu0 %v165
    %191 = vmatprep.subr.mxu0 0.0
    %192 = vmatpush1.msra.mxu0 %v166
    %193 = vmatprep.subr.mxu0 0.0
    %194 = vmatpush1.msra.mxu0 %v167
    %195 = vmatprep.subr.mxu0 0.0
    %196 = vmatpush1.msra.mxu0 %v168
    %197 = vmatprep.subr.mxu0 0.0
    %198 = vmatpush1.msra.mxu0 %v169
    %199 = vmatprep.subr.mxu0 0.0
    %200 = vmatpush1.msra.mxu0 %v170
    %201 = vmatprep.subr.mxu0 0.0
    %202 = vmatpush1.msra.mxu0 %v171
    %203 = vmatprep.subr.mxu0 0.0
    %204 = vmatpush1.msra.mxu0 %v172
    %205 = vmatprep.subr.mxu0 0.0
    %206 = vmatpush1.msra.mxu0 %v173
    %207 = vmatprep.subr.mxu0 0.0
    %208 = vmatpush1.msra.mxu0 %v174
    %209 = vmatprep.subr.mxu0 0.0
    %210 = vmatpush1.msra.mxu0 %v175
    %211 = vmatprep.subr.mxu0 0.0
    %212 = vmatpush1.msra.mxu0 %v176
    %213 = vmatprep.subr.mxu0 0.0
    %214 = vmatpush1.msra.mxu0 %v177
    %215 = vmatprep.subr.mxu0 0.0
    %216 = vmatpush1.msra.mxu0 %v178
    %217 = vmatprep.subr.mxu0 0.0
    %218 = vmatpush1.msra.mxu0 %v179
    %219 = vmatprep.subr.mxu0 0.0
    %220 = vmatpush1.msra.mxu0 0.0
    %221 = vmatprep.subr.mxu0 0.0
    %222 = vmatpush1.msra.mxu0 0.0
    %223 = vmatprep.subr.mxu0 0.0
    %224 = vmatpush1.msra.mxu0 0.0
    %225 = vmatprep.subr.mxu0 0.0
    %226 = vmatpush1.msra.mxu0 0.0
    %227 = vmatprep.subr.mxu0 0.0
    %228 = vmatpush1.msra.mxu0 0.0
    %229 = vmatprep.subr.mxu0 0.0
    %230 = vmatpush1.msra.mxu0 0.0
    %231 = vmatprep.subr.mxu0 0.0
    %232 = vmatpush1.msra.mxu0 0.0
    %233 = vmatprep.subr.mxu0 0.0
    %234 = vmatpush1.msra.mxu0 0.0
    %235 = vmatprep.subr.mxu0 0.0
    %236 = vmatpush1.msra.mxu0 0.0
    %237 = vmatprep.subr.mxu0 0.0
    %238 = vmatpush1.msra.mxu0 0.0
    %239 = vmatprep.subr.mxu0 0.0
    %240 = vmatpush1.msra.mxu0 0.0
    %241 = vmatprep.subr.mxu0 0.0
    %242 = vmatpush1.msra.mxu0 0.0
    %243 = vmatprep.subr.mxu0 0.0
    %244 = vmatpush1.msra.mxu0 0.0
    %245 = vmatprep.subr.mxu0 0.0
    %246 = vmatpush1.msra.mxu0 0.0
    %247 = vmatprep.subr.mxu0 0.0
    %248 = vmatpush1.msra.mxu0 0.0
    %249 = vmatprep.subr.mxu0 0.0
    %250 = vmatpush1.msra.mxu0 0.0
    %251 = vmatprep.mubr.f32.mxu0 0.0
    %252 = vmatmul.mubr.f32.gmra.mrb[0].mxu0 %v163
    %v253 = vpop.f32.mrb[0].mxu0
    %v254 = vadd.f32 %v185, %v253
    %v255 = vpop.f32.mrb[0].mxu0
    %256 = vdwg.mxu0
    %v257 = vld [vmem:[#allocation7] sm:$0xff]
    %v258 = vld [vmem:[#allocation7 + $0x8] sm:$0xff]
    %v259 = vld [vmem:[#allocation7 + $0x10] sm:$0xff]
    %v260 = vld [vmem:[#allocation7 + $0x18] sm:$0xff]
    %v261 = vld [vmem:[#allocation7 + $0x20] sm:$0xff]
    %v262 = vld [vmem:[#allocation7 + $0x28] sm:$0xff]
    %v263 = vld [vmem:[#allocation7 + $0x30] sm:$0xff]
    %v264 = vld [vmem:[#allocation7 + $0x38] sm:$0xff]
    %v265 = vld [vmem:[#allocation7 + $0x40] sm:$0xff]
    %v266 = vld [vmem:[#allocation7 + $0x48] sm:$0xff]
    %v267 = vld [vmem:[#allocation7 + $0x50] sm:$0xff]
    %v268 = vld [vmem:[#allocation7 + $0x58] sm:$0xff]
    %v269 = vld [vmem:[#allocation7 + $0x60] sm:$0xff]
    %v270 = vld [vmem:[#allocation7 + $0x68] sm:$0xff]
    %v271 = vld [vmem:[#allocation7 + $0x70] sm:$0xff]
    %v272 = vld [vmem:[#allocation7 + $0x78] sm:$0xff]
    %v273 = vld [vmem:[%s6] sm:$0x1]
    %v275 = vlaneseq
    %v276 = vshrl.u32 %v275, 7
    %v277 = vsub.s32 0, %v276
    %v278 = vrot.slane %v273, %v277
    %280 = vmatprep.subr.mxu0 0.0
    %281 = vmatpush1.msra.mxu0 %v257
    %282 = vmatprep.subr.mxu0 0.0
    %283 = vmatpush1.msra.mxu0 %v258
    %284 = vmatprep.subr.mxu0 0.0
    %285 = vmatpush1.msra.mxu0 %v259
    %286 = vmatprep.subr.mxu0 0.0
    %287 = vmatpush1.msra.mxu0 %v260
    %288 = vmatprep.subr.mxu0 0.0
    %289 = vmatpush1.msra.mxu0 %v261
    %290 = vmatprep.subr.mxu0 0.0
    %291 = vmatpush1.msra.mxu0 %v262
    %292 = vmatprep.subr.mxu0 0.0
    %293 = vmatpush1.msra.mxu0 %v263
    %294 = vmatprep.subr.mxu0 0.0
    %295 = vmatpush1.msra.mxu0 %v264
    %296 = vmatprep.subr.mxu0 0.0
    %297 = vmatpush1.msra.mxu0 %v265
    %298 = vmatprep.subr.mxu0 0.0
    %299 = vmatpush1.msra.mxu0 %v266
    %300 = vmatprep.subr.mxu0 0.0
    %301 = vmatpush1.msra.mxu0 %v267
    %302 = vmatprep.subr.mxu0 0.0
    %303 = vmatpush1.msra.mxu0 %v268
    %304 = vmatprep.subr.mxu0 0.0
    %305 = vmatpush1.msra.mxu0 %v269
    %306 = vmatprep.subr.mxu0 0.0
    %307 = vmatpush1.msra.mxu0 %v270
    %308 = vmatprep.subr.mxu0 0.0
    %309 = vmatpush1.msra.mxu0 %v271
    %310 = vmatprep.subr.mxu0 0.0
    %311 = vmatpush1.msra.mxu0 %v272
    %312 = vmatprep.subr.mxu0 0.0
    %313 = vmatpush1.msra.mxu0 0.0
    %314 = vmatprep.subr.mxu0 0.0
    %315 = vmatpush1.msra.mxu0 0.0
    %316 = vmatprep.subr.mxu0 0.0
    %317 = vmatpush1.msra.mxu0 0.0
    %318 = vmatprep.subr.mxu0 0.0
    %319 = vmatpush1.msra.mxu0 0.0
    %320 = vmatprep.subr.mxu0 0.0
    %321 = vmatpush1.msra.mxu0 0.0
    %322 = vmatprep.subr.mxu0 0.0
    %323 = vmatpush1.msra.mxu0 0.0
    %324 = vmatprep.subr.mxu0 0.0
    %325 = vmatpush1.msra.mxu0 0.0
    %326 = vmatprep.subr.mxu0 0.0
    %327 = vmatpush1.msra.mxu0 0.0
    %328 = vmatprep.subr.mxu0 0.0
    %329 = vmatpush1.msra.mxu0 0.0
    %330 = vmatprep.subr.mxu0 0.0
    %331 = vmatpush1.msra.mxu0 0.0
    %332 = vmatprep.subr.mxu0 0.0
    %333 = vmatpush1.msra.mxu0 0.0
    %334 = vmatprep.subr.mxu0 0.0
    %335 = vmatpush1.msra.mxu0 0.0
    %336 = vmatprep.subr.mxu0 0.0
    %337 = vmatpush1.msra.mxu0 0.0
    %338 = vmatprep.subr.mxu0 0.0
    %339 = vmatpush1.msra.mxu0 0.0
    %340 = vmatprep.subr.mxu0 0.0
    %341 = vmatpush1.msra.mxu0 0.0
    %342 = vmatprep.subr.mxu0 0.0
    %343 = vmatpush1.msra.mxu0 0.0
    %344 = vmatprep.mubr.f32.mxu0 0.0
    %345 = vmatmul.mubr.f32.gmra.mrb[0].mxu0 %v254
    %v346 = vpop.f32.mrb[0].mxu0
    %v347 = vadd.f32 %v278, %v346
    %v348 = vpop.f32.mrb[0].mxu0
    %349 = vdwg.mxu0
    %350 = vst [vmem:[#allocation8] sm:$0xff] %v347
    // Predicated region
    $region42: #{mlp_forward.1} parent=1 // pred_check
      _
    $region43: #{mlp_forward.1} parent=1 // pred_check_branch
      %352 = sbr.rel (0) target = $region45
    $region44: #{mlp_forward.1} parent=1 // pred_region
      %s354 = ssub.s32 128, 128
      %355 = vsyncadd [#allocation4], %s354
      %s357 = sshll.u32 [#allocation8], 4
      %s358 = int_to_ptr.vmem [resolvable:$true] %s357
      %360 = dma.vmem_to_hbm [thread:$0]  %s358, 128, %s7, [#allocation4]
    $region45: #{mlp_forward.1} parent=1 // pred_fallthru
      _
    // Predicated region
    $region46: #{mlp_forward.1} parent=1 // pred_check
      _
    $region47: #{mlp_forward.1} parent=1 // pred_check_branch
      %362 = sbr.rel (0) target = $region49
    $region48: #{mlp_forward.1} parent=1 // pred_region
      %363 = dma.done [#allocation4], 128
    $region49: #{mlp_forward.1} parent=1 // pred_fallthru
      _
    %364 = vsyncpa [#allocation3], 1
    %365 = vsyncpa [#allocation6], 1
    %366 = vsyncpa [#allocation4], 1

</llo_original>
